<compile_context>
chip_gen: v7x
topology: tpu7x:2x2x1
jax: 0.10.0
libtpu: 0.0.40
codegen_flags: <defaults>
</compile_context>

<pallas_src>
import jax
import jax.numpy as jnp
from jax.experimental import pallas as pl
from jax.experimental.pallas import tpu as pltpu


def mae_kernel(x_ref, w1_ref, b1_ref, w2_ref, b2_ref, out_ref):
    # encoder: Linear (bf16 MXU operands, f32 accumulation) + bias + ReLU (f32)
    x = x_ref[...].astype(jnp.bfloat16)            # in-kernel cast, hidden by DMA/MXU
    h = jnp.dot(x, w1_ref[...], preferred_element_type=jnp.float32)
    h = jnp.maximum(h + b1_ref[...], 0.0)          # (TM, HID) + (1, HID) bcast
    # decoder: Linear (bf16 MXU operands, f32 accumulation) + bias + Sigmoid
    d = jnp.dot(h.astype(jnp.bfloat16), w2_ref[...],
                preferred_element_type=jnp.float32)
    d = d + b2_ref[...]                            # (TM, D) + (1, D) bcast
    # sigmoid(d) = 1 / (1 + exp(-d)); approx reciprocal stays on the EUP slot.
    s = pl.reciprocal(1.0 + jnp.exp(-d), approx=True)
    out_ref[...] = s.astype(out_ref.dtype)


def _round_up(n, m):
    return ((n + m - 1) // m) * m


def _pick_batch_tile(B, D, out_bytes, *, tile_budget_bytes=24 << 20, tm_cap=512):
    """Largest batch tile that fits the VMEM tile budget (capped at tm_cap),
    with balanced tiles so last-tile padding waste is < 8 rows per tile."""
    per_row = 2 * D * (4 + out_bytes)          # double-buffered f32 x tile + out tile
    cap = max(8, (tile_budget_bytes // per_row) // 8 * 8)
    tm_max = max(8, min(tm_cap, cap))
    n_tiles = pl.cdiv(B, tm_max)
    return _round_up(pl.cdiv(B, n_tiles), 8)


def masked_autoencoder_forward(x_nchw, w1, b1, w2, b2, *,
                               out_dtype=jnp.bfloat16, tm=None):
    """Forward: sigmoid(relu(x @ w1 + b1) @ w2 + b2), reshaped back to NCHW.

    x_nchw: (B, C, H, W).  w1: (D, HID), w2: (HID, D), D = C*H*W.
    Pass w1/w2 already in bf16 to keep the cast out of the hot path.
    """
    B, C, H, W = x_nchw.shape
    D = C * H * W
    HID = w1.shape[1]
    assert w1.shape == (D, HID) and w2.shape == (HID, D)

    out_bytes = jnp.dtype(out_dtype).itemsize
    if tm is None:
        tm = _pick_batch_tile(B, D, out_bytes)
    grid = (pl.cdiv(B, tm),)                       # partial last tile is masked

    # Free reshape (contiguous); the f32->bf16 cast of x happens in-kernel.
    x2d = x_nchw.reshape(B, D)
    # Weight casts hoisted: only cast if the caller didn't already.
    w1_bf = w1 if w1.dtype == jnp.bfloat16 else w1.astype(jnp.bfloat16)
    w2_bf = w2 if w2.dtype == jnp.bfloat16 else w2.astype(jnp.bfloat16)
    b1_2d = b1.reshape(1, HID).astype(jnp.float32)
    b2_2d = b2.reshape(1, D).astype(jnp.float32)

    # VMEM footprint: single-buffered resident weights + double-buffered tiles.
    weight_bytes = (w1_bf.size + w2_bf.size) * 2 + (b1_2d.size + b2_2d.size) * 4
    tile_bytes = 2 * tm * D * (4 + out_bytes)
    # TODO(synk): if weight_bytes alone approaches the per-TC VMEM budget
    # (very large D*HID, esp. v7x's 64 MiB/TC), split the matmuls over a
    # reduction / output-column grid axis instead of keeping both resident.
    vmem_limit = int(min(max(1.25 * (weight_bytes + tile_bytes) + (2 << 20),
                             16 << 20), 56 << 20))

    resident = pl.Buffered(buffer_count=1)   # constant index_map -> DMA'd once
    cost = pl.CostEstimate(
        flops=2 * 2 * B * D * HID,                  # two matmuls
        transcendentals=B * D,                      # exp in sigmoid
        bytes_accessed=x2d.size * 4 + weight_bytes + B * D * out_bytes,
    )

    out2d = pl.pallas_call(
        mae_kernel,
        out_shape=jax.ShapeDtypeStruct((B, D), out_dtype),
        grid_spec=pltpu.PrefetchScalarGridSpec(
            num_scalar_prefetch=0,
            grid=grid,
            in_specs=[
                pl.BlockSpec((tm, D), lambda i: (i, 0)),       # x: streamed f32 tiles
                pl.BlockSpec((D, HID), lambda i: (0, 0), pipeline_mode=resident),
                pl.BlockSpec((1, HID), lambda i: (0, 0), pipeline_mode=resident),
                pl.BlockSpec((HID, D), lambda i: (0, 0), pipeline_mode=resident),
                pl.BlockSpec((1, D), lambda i: (0, 0), pipeline_mode=resident),
            ],
            out_specs=pl.BlockSpec((tm, D), lambda i: (i, 0)),
        ),
        compiler_params=pltpu.CompilerParams(
            dimension_semantics=("parallel",),      # batch splits across TCs (v7x)
            vmem_limit_bytes=vmem_limit,
        ),
        cost_estimate=cost,
    )(x2d, w1_bf, b1_2d, w2_bf, b2_2d)

    return out2d.reshape(B, C, H, W)


def _ref_forward(x_nchw, w1, b1, w2, b2):
    """Plain-JAX reference with the same bf16-operand / f32-accumulate math."""
    B = x_nchw.shape[0]
    x2d = x_nchw.reshape(B, -1).astype(jnp.bfloat16)
    h = jnp.dot(x2d, w1.astype(jnp.bfloat16), preferred_element_type=jnp.float32)
    h = jnp.maximum(h + b1, 0.0)
    d = jnp.dot(h.astype(jnp.bfloat16), w2.astype(jnp.bfloat16),
                preferred_element_type=jnp.float32)
    d = jax.nn.sigmoid(d + b2)
    return d.reshape(x_nchw.shape)


if __name__ == "__main__":
    # Small shapes consistent with the module's forward: batch=2, channels=4,
    # spatial=16 -> D = 4*16*16 = 1024, hidden = 128.
    B, C, H, W = 2, 4, 16, 16
    D = C * H * W
    HID = 128

    key = jax.random.PRNGKey(0)
    kx, kw1, kb1, kw2, kb2 = jax.random.split(key, 5)

    x = jax.random.normal(kx, (B, C, H, W), dtype=jnp.float32)
    w1 = jax.random.normal(kw1, (D, HID), dtype=jnp.float32) * (1.0 / D ** 0.5)
    b1 = jax.random.normal(kb1, (HID,), dtype=jnp.float32) * 0.01
    w2 = jax.random.normal(kw2, (HID, D), dtype=jnp.float32) * (1.0 / HID ** 0.5)
    b2 = jax.random.normal(kb2, (D,), dtype=jnp.float32) * 0.01

    # Hoist the one-time weight cast out of the per-call hot path.
    w1_bf = w1.astype(jnp.bfloat16)
    w2_bf = w2.astype(jnp.bfloat16)

    out = masked_autoencoder_forward(x, w1_bf, b1, w2_bf, b2)
    out = jax.block_until_ready(out)

    ref = jax.block_until_ready(_ref_forward(x, w1, b1, w2, b2))
    assert out.shape == (B, C, H, W)
    # bf16 MXU operands / bf16 output with f32 accumulation: loose tolerance.
    assert jnp.allclose(out.astype(jnp.float32), ref, atol=2e-2, rtol=2e-2), \
        "mismatch vs reference"

    print("KERNEL_OK")
</pallas_src>

<mosaic_0001>
module attributes {stable_mosaic.version = 11 : i64} {
  func.func @mae_kernel(%arg0: i32, %arg1: memref<8x1024xf32, #tpu.memory_space<vmem>>, %arg2: memref<1024x128xbf16, #tpu.memory_space<vmem>>, %arg3: memref<1x128xf32, #tpu.memory_space<vmem>>, %arg4: memref<128x1024xbf16, #tpu.memory_space<vmem>>, %arg5: memref<1x1024xf32, #tpu.memory_space<vmem>>, %arg6: memref<8x1024xbf16, #tpu.memory_space<vmem>>) attributes {dimension_semantics = [#tpu.dimension_semantics<parallel>], iteration_bounds = array<i64: 1>, scalar_prefetch = 0 : i64, scratch_operands = 0 : i64, tpu.core_type = #tpu.core_type<tc>, window_params = [{transform_indices = @transform_0, window_bounds = array<i64: 8, 1024>}, {pipeline_mode = #tpu.pipeline_mode<synchronous>, transform_indices = @transform_1, window_bounds = array<i64: 1024, 128>}, {pipeline_mode = #tpu.pipeline_mode<synchronous>, transform_indices = @transform_2, window_bounds = array<i64: 1, 128>}, {pipeline_mode = #tpu.pipeline_mode<synchronous>, transform_indices = @transform_3, window_bounds = array<i64: 128, 1024>}, {pipeline_mode = #tpu.pipeline_mode<synchronous>, transform_indices = @transform_4, window_bounds = array<i64: 1, 1024>}, {transform_indices = @transform_5, window_bounds = array<i64: 8, 1024>}]} {
    %c0 = arith.constant 0 : index
    %c0_0 = arith.constant 0 : index
    %0 = vector.load %arg1[%c0, %c0_0] : memref<8x1024xf32, #tpu.memory_space<vmem>>, vector<8x1024xf32>
    %1 = arith.truncf %0 : vector<8x1024xf32> to vector<8x1024xbf16>
    %c0_1 = arith.constant 0 : index
    %c0_2 = arith.constant 0 : index
    %2 = vector.load %arg2[%c0_1, %c0_2] : memref<1024x128xbf16, #tpu.memory_space<vmem>>, vector<1024x128xbf16>
    %cst = arith.constant dense<0.000000e+00> : vector<8x128xf32>
    %3 = tpu.matmul %1, %2, %cst {dimension_numbers = #tpu.dot_dimension_numbers<[1], [0], [0], [1], [0, 0, 1, 1], [], []>} : vector<8x1024xbf16>, vector<1024x128xbf16>, vector<8x128xf32> -> vector<8x128xf32>
    %c0_3 = arith.constant 0 : index
    %c0_4 = arith.constant 0 : index
    %4 = vector.load %arg3[%c0_3, %c0_4] : memref<1x128xf32, #tpu.memory_space<vmem>>, vector<1x128xf32>
    %5 = vector.broadcast %4 : vector<1x128xf32> to vector<8x128xf32>
    %6 = arith.addf %3, %5 : vector<8x128xf32>
    %cst_5 = arith.constant 0.000000e+00 : f32
    %7 = vector.broadcast %cst_5 : f32 to vector<8x128xf32>
    %8 = arith.maximumf %6, %7 : vector<8x128xf32>
    %9 = arith.truncf %8 : vector<8x128xf32> to vector<8x128xbf16>
    %c0_6 = arith.constant 0 : index
    %c0_7 = arith.constant 0 : index
    %10 = vector.load %arg4[%c0_6, %c0_7] : memref<128x1024xbf16, #tpu.memory_space<vmem>>, vector<128x1024xbf16>
    %cst_8 = arith.constant dense<0.000000e+00> : vector<8x1024xf32>
    %11 = tpu.matmul %9, %10, %cst_8 {dimension_numbers = #tpu.dot_dimension_numbers<[1], [0], [0], [1], [0, 0, 1, 1], [], []>} : vector<8x128xbf16>, vector<128x1024xbf16>, vector<8x1024xf32> -> vector<8x1024xf32>
    %c0_9 = arith.constant 0 : index
    %c0_10 = arith.constant 0 : index
    %12 = vector.load %arg5[%c0_9, %c0_10] : memref<1x1024xf32, #tpu.memory_space<vmem>>, vector<1x1024xf32>
    %13 = vector.broadcast %12 : vector<1x1024xf32> to vector<8x1024xf32>
    %14 = arith.addf %11, %13 : vector<8x1024xf32>
    %cst_11 = arith.constant 0.000000e+00 : f32
    %15 = vector.broadcast %cst_11 : f32 to vector<8x1024xf32>
    %16 = arith.subf %15, %14 : vector<8x1024xf32>
    %17 = math.exp %16 : vector<8x1024xf32>
    %cst_12 = arith.constant 1.000000e+00 : f32
    %18 = vector.broadcast %cst_12 : f32 to vector<8x1024xf32>
    %19 = arith.addf %18, %17 : vector<8x1024xf32>
    %20 = tpu.reciprocal %19 {approx = true} : vector<8x1024xf32> -> vector<8x1024xf32>
    %21 = arith.truncf %20 : vector<8x1024xf32> to vector<8x1024xbf16>
    %c0_13 = arith.constant 0 : index
    %c0_14 = arith.constant 0 : index
    %22 = vector.load %arg6[%c0_13, %c0_14] : memref<8x1024xbf16, #tpu.memory_space<vmem>>, vector<8x1024xbf16>
    tpu.vector_store %arg6[%c0_13, %c0_14], %21 {strides = array<i32>} : memref<8x1024xbf16, #tpu.memory_space<vmem>>, vector<8x1024xbf16>,
    return
  }
  func.func @transform_0(%arg0: i32) -> (i32, i32) {
    %c0_i32 = arith.constant 0 : i32
    %c0_i32_0 = arith.constant 0 : i32
    return %arg0, %c0_i32 : i32, i32
  }
  func.func @transform_1(%arg0: i32) -> (i32, i32) {
    %c0_i32 = arith.constant 0 : i32
    %c0_i32_0 = arith.constant 0 : i32
    %c0_i32_1 = arith.constant 0 : i32
    return %c0_i32, %c0_i32_0 : i32, i32
  }
  func.func @transform_2(%arg0: i32) -> (i32, i32) {
    %c0_i32 = arith.constant 0 : i32
    %c0_i32_0 = arith.constant 0 : i32
    %c0_i32_1 = arith.constant 0 : i32
    return %c0_i32, %c0_i32_0 : i32, i32
  }
  func.func @transform_3(%arg0: i32) -> (i32, i32) {
    %c0_i32 = arith.constant 0 : i32
    %c0_i32_0 = arith.constant 0 : i32
    %c0_i32_1 = arith.constant 0 : i32
    return %c0_i32, %c0_i32_0 : i32, i32
  }
  func.func @transform_4(%arg0: i32) -> (i32, i32) {
    %c0_i32 = arith.constant 0 : i32
    %c0_i32_0 = arith.constant 0 : i32
    %c0_i32_1 = arith.constant 0 : i32
    return %c0_i32, %c0_i32_0 : i32, i32
  }
  func.func @transform_5(%arg0: i32) -> (i32, i32) {
    %c0_i32 = arith.constant 0 : i32
    %c0_i32_0 = arith.constant 0 : i32
    return %arg0, %c0_i32 : i32, i32
  }
}

</mosaic_0001>

<llo_original>
// kernel: tpu_custom_call.1
$region0: #{tpu_custom_call.1}
  #allocation0 [shape = 'u32[]', space=smem, size = 0x4, offset = 0x4, fixed_abs, tag = 'smem constant byte address 0x4 - core index']
  #allocation1 [shape = 'u32[144,128]{1,0:T(1,128)}', space=vmem, size = 0x12000, scoped, tag = 'internal scratch']
  %s0 = inlined_call_operand.hbm [shape: f32[2,1024], index: 0, kind: input, shape index: {}]
  %s1 = inlined_call_operand.hbm [shape: bf16[1024,128], index: 1, kind: input, shape index: {}]
  %s2 = inlined_call_operand.vmem [shape: f32[1,128], index: 2, kind: input, shape index: {}]
  %s3 = inlined_call_operand.hbm [shape: bf16[128,1024], index: 3, kind: input, shape index: {}]
  %s4 = inlined_call_operand.vmem [shape: f32[1,1024], index: 4, kind: input, shape index: {}]
  %s5 = inlined_call_operand.hbm [shape: bf16[2,1024], index: 5, kind: output, shape index: {}]
  %s6 = sld [smem:[#allocation0]]
  $region42: #{tpu_custom_call.1} parent=0
    _
  %s8 = ssub.s32 1, %s6
  %s9 = scalar_select 0, %s8, %s6
  $region1: #{tpu_custom_call.1} parent=0
    #allocation2 [shape = 'u8[32768]{0}', space=vmem, size = 0x8000, scoped, tag = 'input window, operand 0, single buffered']
    #allocation3 [shape = 's32[1]{0}', space=sflag, size = 0x4, scoped, tag = 'scoped memory for tpu_custom_call.1']
    #allocation4 [shape = 's32[1]{0}', space=sflag, size = 0x4, scoped, tag = 'scoped memory for tpu_custom_call.1']
    #allocation5 [shape = 'u8[262144]{0}', space=vmem, size = 0x40000, scoped, tag = 'input window, operand 1, single buffered']
    #allocation6 [shape = 's32[1]{0}', space=sflag, size = 0x4, scoped, tag = 'scoped memory for tpu_custom_call.1']
    #allocation7 [shape = 'u8[262144]{0}', space=vmem, size = 0x40000, scoped, tag = 'input window, operand 3, single buffered']
    #allocation8 [shape = 'u8[16384]{0}', space=vmem, size = 0x4000, scoped, tag = 'output window, operand 0, single buffered']
    %10 = vsyncpa [#allocation3], 0
    %11 = vsyncpa [#allocation6], 0
    %12 = vsyncpa [#allocation4], 0
    // Predicated region
    $region2: #{tpu_custom_call.1} parent=1 // pred_check
      _
    $region3: #{tpu_custom_call.1} parent=1 // pred_check_branch
      %14 = sbr.rel (0) target = $region5
    $region4: #{tpu_custom_call.1} parent=1 // pred_region
      %s16 = ssub.s32 1024, 256
      %17 = vsyncadd [#allocation3], %s16
      %s18 = sshll.u32 [#allocation2], 4
      %s19 = int_to_ptr.vmem [resolvable:$true] %s18
      %24 = dma.hbm_to_vmem [thread:$0]  %s0, 256, %s19, [#allocation3], 256, 256, 16
    $region5: #{tpu_custom_call.1} parent=1 // pred_fallthru
      _
    // Predicated region
    $region6: #{tpu_custom_call.1} parent=1 // pred_check
      _
    $region7: #{tpu_custom_call.1} parent=1 // pred_check_branch
      %26 = sbr.rel (0) target = $region9
    $region8: #{tpu_custom_call.1} parent=1 // pred_region
      %s28 = ssub.s32 8192, 8192
      %29 = vsyncadd [#allocation6], %s28
      %s30 = sshll.u32 [#allocation5], 4
      %s31 = int_to_ptr.vmem [resolvable:$true] %s30
      %36 = dma.hbm_to_vmem [thread:$0]  %s1, 8192, %s31, [#allocation6], 64, 64, 4
    $region9: #{tpu_custom_call.1} parent=1 // pred_fallthru
      _
    // Predicated region
    $region10: #{tpu_custom_call.1} parent=1 // pred_check
      _
    $region11: #{tpu_custom_call.1} parent=1 // pred_check_branch
      %38 = sbr.rel (0) target = $region13
    $region12: #{tpu_custom_call.1} parent=1 // pred_region
      _
    $region13: #{tpu_custom_call.1} parent=1 // pred_fallthru
      _
    // Predicated region
    $region14: #{tpu_custom_call.1} parent=1 // pred_check
      _
    $region15: #{tpu_custom_call.1} parent=1 // pred_check_branch
      %40 = sbr.rel (0) target = $region17
    $region16: #{tpu_custom_call.1} parent=1 // pred_region
      %s42 = ssub.s32 8192, 8192
      %43 = vsyncadd [#allocation6], %s42
      %s44 = sshll.u32 [#allocation7], 4
      %s45 = int_to_ptr.vmem [resolvable:$true] %s44
      %50 = dma.hbm_to_vmem [thread:$0]  %s3, 8192, %s45, [#allocation6], 512, 512, 32
    $region17: #{tpu_custom_call.1} parent=1 // pred_fallthru
      _
    // Predicated region
    $region18: #{tpu_custom_call.1} parent=1 // pred_check
      _
    $region19: #{tpu_custom_call.1} parent=1 // pred_check_branch
      %52 = sbr.rel (0) target = $region21
    $region20: #{tpu_custom_call.1} parent=1 // pred_region
      _
    $region21: #{tpu_custom_call.1} parent=1 // pred_fallthru
      _
    // Predicated region
    $region22: #{tpu_custom_call.1} parent=1 // pred_check
      _
    $region23: #{tpu_custom_call.1} parent=1 // pred_check_branch
      %54 = sbr.rel (0) target = $region25
    $region24: #{tpu_custom_call.1} parent=1 // pred_region
      %55 = dma.done [#allocation3], 1024
    $region25: #{tpu_custom_call.1} parent=1 // pred_fallthru
      _
    // Predicated region
    $region26: #{tpu_custom_call.1} parent=1 // pred_check
      _
    $region27: #{tpu_custom_call.1} parent=1 // pred_check_branch
      %57 = sbr.rel (0) target = $region29
    $region28: #{tpu_custom_call.1} parent=1 // pred_region
      %58 = dma.done [#allocation6], 8192
    $region29: #{tpu_custom_call.1} parent=1 // pred_fallthru
      _
    // Predicated region
    $region30: #{tpu_custom_call.1} parent=1 // pred_check
      _
    $region31: #{tpu_custom_call.1} parent=1 // pred_check_branch
      %60 = sbr.rel (0) target = $region33
    $region32: #{tpu_custom_call.1} parent=1 // pred_region
      %61 = dma.done [#allocation6], 8192
    $region33: #{tpu_custom_call.1} parent=1 // pred_fallthru
      _
    %v63 = vld [vmem:[#allocation2] sm:$0xff]
    %v64 = vld [vmem:[#allocation2 + $0x8] sm:$0xff]
    %v65 = vld [vmem:[#allocation2 + $0x10] sm:$0xff]
    %v66 = vld [vmem:[#allocation2 + $0x18] sm:$0xff]
    %v67 = vld [vmem:[#allocation2 + $0x20] sm:$0xff]
    %v68 = vld [vmem:[#allocation2 + $0x28] sm:$0xff]
    %v69 = vld [vmem:[#allocation2 + $0x30] sm:$0xff]
    %v70 = vld [vmem:[#allocation2 + $0x38] sm:$0xff]
    %v79 = vcombine.low %v63, %v65
    %v80 = vcombine.high %v63, %v65
    %v81 = vcombine.low %v67, %v69
    %v82 = vcombine.high %v67, %v69
    %v84 = vunpack.c.l.s4 1983009808
    %v85 = vunpack.c.0.s8 %v84
    %v86 = vlaneseq
    %v87 = vshrl.u32 %v86, 7
    %v88 = vsub.s32 %v85, %v87
    %v89 = vrot.slane %v79, %v88
    %v91 = vunpack.c.l.s4 1983009808
    %v92 = vunpack.c.0.s8 %v91
    %v93 = vlaneseq
    %v94 = vshrl.u32 %v93, 7
    %v95 = vsub.s32 %v92, %v94
    %v96 = vrot.slane %v80, %v95
    %v98 = vunpack.c.l.s4 1983009808
    %v99 = vunpack.c.0.s8 %v98
    %v100 = vlaneseq
    %v101 = vshrl.u32 %v100, 7
    %v102 = vsub.s32 %v99, %v101
    %v103 = vrot.slane %v81, %v102
    %v105 = vunpack.c.l.s4 1983009808
    %v106 = vunpack.c.0.s8 %v105
    %v107 = vlaneseq
    %v108 = vshrl.u32 %v107, 7
    %v109 = vsub.s32 %v106, %v108
    %v110 = vrot.slane %v82, %v109
    %v111 = vcombine.low %v89, %v103
    %v112 = vcombine.high %v89, %v103
    %v113 = vcombine.low %v96, %v110
    %v114 = vcombine.high %v96, %v110
    %v115 = vcombine.low %v64, %v66
    %v116 = vcombine.high %v64, %v66
    %v117 = vcombine.low %v68, %v70
    %v118 = vcombine.high %v68, %v70
    %v120 = vunpack.c.l.s4 1983009808
    %v121 = vunpack.c.0.s8 %v120
    %v122 = vlaneseq
    %v123 = vshrl.u32 %v122, 7
    %v124 = vsub.s32 %v121, %v123
    %v125 = vrot.slane %v115, %v124
    %v127 = vunpack.c.l.s4 1983009808
    %v128 = vunpack.c.0.s8 %v127
    %v129 = vlaneseq
    %v130 = vshrl.u32 %v129, 7
    %v131 = vsub.s32 %v128, %v130
    %v132 = vrot.slane %v116, %v131
    %v134 = vunpack.c.l.s4 1983009808
    %v135 = vunpack.c.0.s8 %v134
    %v136 = vlaneseq
    %v137 = vshrl.u32 %v136, 7
    %v138 = vsub.s32 %v135, %v137
    %v139 = vrot.slane %v117, %v138
    %v141 = vunpack.c.l.s4 1983009808
    %v142 = vunpack.c.0.s8 %v141
    %v143 = vlaneseq
    %v144 = vshrl.u32 %v143, 7
    %v145 = vsub.s32 %v142, %v144
    %v146 = vrot.slane %v118, %v145
    %v147 = vcombine.low %v125, %v139
    %v148 = vcombine.high %v125, %v139
    %v149 = vcombine.low %v132, %v146
    %v150 = vcombine.high %v132, %v146
    %v159 = vpack.c.bf16 %v111, %v111
    %v160 = vpack.c.bf16 %v112, %v112
    %v161 = vpack.c.bf16 %v113, %v113
    %v162 = vpack.c.bf16 %v114, %v114
    %v163 = vpack.c.bf16 %v147, %v147
    %v164 = vpack.c.bf16 %v148, %v148
    %v165 = vpack.c.bf16 %v149, %v149
    %v166 = vpack.c.bf16 %v150, %v150
    %v167 = vld [vmem:[#allocation5] sm:$0xf]
    %v168 = vld [vmem:[#allocation5 + $0x4] sm:$0xf]
    %v169 = vld [vmem:[#allocation5 + $0x8] sm:$0xf]
    %v170 = vld [vmem:[#allocation5 + $0xc] sm:$0xf]
    %v171 = vld [vmem:[#allocation5 + $0x10] sm:$0xf]
    %v172 = vld [vmem:[#allocation5 + $0x14] sm:$0xf]
    %v173 = vld [vmem:[#allocation5 + $0x18] sm:$0xf]
    %v174 = vld [vmem:[#allocation5 + $0x1c] sm:$0xf]
    %v175 = vld [vmem:[#allocation5 + $0x20] sm:$0xf]
    %v176 = vld [vmem:[#allocation5 + $0x24] sm:$0xf]
    %v177 = vld [vmem:[#allocation5 + $0x28] sm:$0xf]
    %v178 = vld [vmem:[#allocation5 + $0x2c] sm:$0xf]
    %v179 = vld [vmem:[#allocation5 + $0x30] sm:$0xf]
    %v180 = vld [vmem:[#allocation5 + $0x34] sm:$0xf]
    %v181 = vld [vmem:[#allocation5 + $0x38] sm:$0xf]
    %v182 = vld [vmem:[#allocation5 + $0x3c] sm:$0xf]
    %v183 = vld [vmem:[#allocation5 + $0x40] sm:$0xf]
    %v184 = vld [vmem:[#allocation5 + $0x44] sm:$0xf]
    %v185 = vld [vmem:[#allocation5 + $0x48] sm:$0xf]
    %v186 = vld [vmem:[#allocation5 + $0x4c] sm:$0xf]
    %v187 = vld [vmem:[#allocation5 + $0x50] sm:$0xf]
    %v188 = vld [vmem:[#allocation5 + $0x54] sm:$0xf]
    %v189 = vld [vmem:[#allocation5 + $0x58] sm:$0xf]
    %v190 = vld [vmem:[#allocation5 + $0x5c] sm:$0xf]
    %v191 = vld [vmem:[#allocation5 + $0x60] sm:$0xf]
    %v192 = vld [vmem:[#allocation5 + $0x64] sm:$0xf]
    %v193 = vld [vmem:[#allocation5 + $0x68] sm:$0xf]
    %v194 = vld [vmem:[#allocation5 + $0x6c] sm:$0xf]
    %v195 = vld [vmem:[#allocation5 + $0x70] sm:$0xf]
    %v196 = vld [vmem:[#allocation5 + $0x74] sm:$0xf]
    %v197 = vld [vmem:[#allocation5 + $0x78] sm:$0xf]
    %v198 = vld [vmem:[#allocation5 + $0x7c] sm:$0xf]
    %v199 = vld [vmem:[#allocation5 + $0x80] sm:$0xf]
    %v200 = vld [vmem:[#allocation5 + $0x84] sm:$0xf]
    %v201 = vld [vmem:[#allocation5 + $0x88] sm:$0xf]
    %v202 = vld [vmem:[#allocation5 + $0x8c] sm:$0xf]
    %v203 = vld [vmem:[#allocation5 + $0x90] sm:$0xf]
    %v204 = vld [vmem:[#allocation5 + $0x94] sm:$0xf]
    %v205 = vld [vmem:[#allocation5 + $0x98] sm:$0xf]
    %v206 = vld [vmem:[#allocation5 + $0x9c] sm:$0xf]
    %v207 = vld [vmem:[#allocation5 + $0xa0] sm:$0xf]
    %v208 = vld [vmem:[#allocation5 + $0xa4] sm:$0xf]
    %v209 = vld [vmem:[#allocation5 + $0xa8] sm:$0xf]
    %v210 = vld [vmem:[#allocation5 + $0xac] sm:$0xf]
    %v211 = vld [vmem:[#allocation5 + $0xb0] sm:$0xf]
    %v212 = vld [vmem:[#allocation5 + $0xb4] sm:$0xf]
    %v213 = vld [vmem:[#allocation5 + $0xb8] sm:$0xf]
    %v214 = vld [vmem:[#allocation5 + $0xbc] sm:$0xf]
    %v215 = vld [vmem:[#allocation5 + $0xc0] sm:$0xf]
    %v216 = vld [vmem:[#allocation5 + $0xc4] sm:$0xf]
    %v217 = vld [vmem:[#allocation5 + $0xc8] sm:$0xf]
    %v218 = vld [vmem:[#allocation5 + $0xcc] sm:$0xf]
    %v219 = vld [vmem:[#allocation5 + $0xd0] sm:$0xf]
    %v220 = vld [vmem:[#allocation5 + $0xd4] sm:$0xf]
    %v221 = vld [vmem:[#allocation5 + $0xd8] sm:$0xf]
    %v222 = vld [vmem:[#allocation5 + $0xdc] sm:$0xf]
    %v223 = vld [vmem:[#allocation5 + $0xe0] sm:$0xf]
    %v224 = vld [vmem:[#allocation5 + $0xe4] sm:$0xf]
    %v225 = vld [vmem:[#allocation5 + $0xe8] sm:$0xf]
    %v226 = vld [vmem:[#allocation5 + $0xec] sm:$0xf]
    %v227 = vld [vmem:[#allocation5 + $0xf0] sm:$0xf]
    %v228 = vld [vmem:[#allocation5 + $0xf4] sm:$0xf]
    %v229 = vld [vmem:[#allocation5 + $0xf8] sm:$0xf]
    %v230 = vld [vmem:[#allocation5 + $0xfc] sm:$0xf]
    %v231 = vld [vmem:[#allocation5 + $0x100] sm:$0xf]
    %v232 = vld [vmem:[#allocation5 + $0x104] sm:$0xf]
    %v233 = vld [vmem:[#allocation5 + $0x108] sm:$0xf]
    %v234 = vld [vmem:[#allocation5 + $0x10c] sm:$0xf]
    %v235 = vld [vmem:[#allocation5 + $0x110] sm:$0xf]
    %v236 = vld [vmem:[#allocation5 + $0x114] sm:$0xf]
    %v237 = vld [vmem:[#allocation5 + $0x118] sm:$0xf]
    %v238 = vld [vmem:[#allocation5 + $0x11c] sm:$0xf]
    %v239 = vld [vmem:[#allocation5 + $0x120] sm:$0xf]
    %v240 = vld [vmem:[#allocation5 + $0x124] sm:$0xf]
    %v241 = vld [vmem:[#allocation5 + $0x128] sm:$0xf]
    %v242 = vld [vmem:[#allocation5 + $0x12c] sm:$0xf]
    %v243 = vld [vmem:[#allocation5 + $0x130] sm:$0xf]
    %v244 = vld [vmem:[#allocation5 + $0x134] sm:$0xf]
    %v245 = vld [vmem:[#allocation5 + $0x138] sm:$0xf]
    %v246 = vld [vmem:[#allocation5 + $0x13c] sm:$0xf]
    %v247 = vld [vmem:[#allocation5 + $0x140] sm:$0xf]
    %v248 = vld [vmem:[#allocation5 + $0x144] sm:$0xf]
    %v249 = vld [vmem:[#allocation5 + $0x148] sm:$0xf]
    %v250 = vld [vmem:[#allocation5 + $0x14c] sm:$0xf]
    %v251 = vld [vmem:[#allocation5 + $0x150] sm:$0xf]
    %v252 = vld [vmem:[#allocation5 + $0x154] sm:$0xf]
    %v253 = vld [vmem:[#allocation5 + $0x158] sm:$0xf]
    %v254 = vld [vmem:[#allocation5 + $0x15c] sm:$0xf]
    %v255 = vld [vmem:[#allocation5 + $0x160] sm:$0xf]
    %v256 = vld [vmem:[#allocation5 + $0x164] sm:$0xf]
    %v257 = vld [vmem:[#allocation5 + $0x168] sm:$0xf]
    %v258 = vld [vmem:[#allocation5 + $0x16c] sm:$0xf]
    %v259 = vld [vmem:[#allocation5 + $0x170] sm:$0xf]
    %v260 = vld [vmem:[#allocation5 + $0x174] sm:$0xf]
    %v261 = vld [vmem:[#allocation5 + $0x178] sm:$0xf]
    %v262 = vld [vmem:[#allocation5 + $0x17c] sm:$0xf]
    %v263 = vld [vmem:[#allocation5 + $0x180] sm:$0xf]
    %v264 = vld [vmem:[#allocation5 + $0x184] sm:$0xf]
    %v265 = vld [vmem:[#allocation5 + $0x188] sm:$0xf]
    %v266 = vld [vmem:[#allocation5 + $0x18c] sm:$0xf]
    %v267 = vld [vmem:[#allocation5 + $0x190] sm:$0xf]
    %v268 = vld [vmem:[#allocation5 + $0x194] sm:$0xf]
    %v269 = vld [vmem:[#allocation5 + $0x198] sm:$0xf]
    %v270 = vld [vmem:[#allocation5 + $0x19c] sm:$0xf]
    %v271 = vld [vmem:[#allocation5 + $0x1a0] sm:$0xf]
    %v272 = vld [vmem:[#allocation5 + $0x1a4] sm:$0xf]
    %v273 = vld [vmem:[#allocation5 + $0x1a8] sm:$0xf]
    %v274 = vld [vmem:[#allocation5 + $0x1ac] sm:$0xf]
    %v275 = vld [vmem:[#allocation5 + $0x1b0] sm:$0xf]
    %v276 = vld [vmem:[#allocation5 + $0x1b4] sm:$0xf]
    %v277 = vld [vmem:[#allocation5 + $0x1b8] sm:$0xf]
    %v278 = vld [vmem:[#allocation5 + $0x1bc] sm:$0xf]
    %v279 = vld [vmem:[#allocation5 + $0x1c0] sm:$0xf]
    %v280 = vld [vmem:[#allocation5 + $0x1c4] sm:$0xf]
    %v281 = vld [vmem:[#allocation5 + $0x1c8] sm:$0xf]
    %v282 = vld [vmem:[#allocation5 + $0x1cc] sm:$0xf]
    %v283 = vld [vmem:[#allocation5 + $0x1d0] sm:$0xf]
    %v284 = vld [vmem:[#allocation5 + $0x1d4] sm:$0xf]
    %v285 = vld [vmem:[#allocation5 + $0x1d8] sm:$0xf]
    %v286 = vld [vmem:[#allocation5 + $0x1dc] sm:$0xf]
    %v287 = vld [vmem:[#allocation5 + $0x1e0] sm:$0xf]
    %v288 = vld [vmem:[#allocation5 + $0x1e4] sm:$0xf]
    %v289 = vld [vmem:[#allocation5 + $0x1e8] sm:$0xf]
    %v290 = vld [vmem:[#allocation5 + $0x1ec] sm:$0xf]
    %v291 = vld [vmem:[#allocation5 + $0x1f0] sm:$0xf]
    %v292 = vld [vmem:[#allocation5 + $0x1f4] sm:$0xf]
    %v293 = vld [vmem:[#allocation5 + $0x1f8] sm:$0xf]
    %v294 = vld [vmem:[#allocation5 + $0x1fc] sm:$0xf]
    %v295 = vld [vmem:[%s2] sm:$0x1]
    %v297 = vlaneseq
    %v298 = vshrl.u32 %v297, 7
    %v299 = vsub.s32 0, %v298
    %v300 = vrot.slane %v295, %v299
    %v430 = vunpack.c.l.b16 %v167
    %v431 = vunpack.c.l.b16 %v168
    %v432 = vunpack.c.l.b16 %v169
    %v433 = vunpack.c.l.b16 %v170
    %v434 = vunpack.c.l.b16 %v171
    %v435 = vunpack.c.l.b16 %v172
    %v436 = vunpack.c.l.b16 %v173
    %v437 = vunpack.c.l.b16 %v174
    %v438 = vunpack.c.l.b16 %v175
    %v439 = vunpack.c.l.b16 %v176
    %v440 = vunpack.c.l.b16 %v177
    %v441 = vunpack.c.l.b16 %v178
    %v442 = vunpack.c.l.b16 %v179
    %v443 = vunpack.c.l.b16 %v180
    %v444 = vunpack.c.l.b16 %v181
    %v445 = vunpack.c.l.b16 %v182
    %v446 = vunpack.c.l.b16 %v183
    %v447 = vunpack.c.l.b16 %v184
    %v448 = vunpack.c.l.b16 %v185
    %v449 = vunpack.c.l.b16 %v186
    %v450 = vunpack.c.l.b16 %v187
    %v451 = vunpack.c.l.b16 %v188
    %v452 = vunpack.c.l.b16 %v189
    %v453 = vunpack.c.l.b16 %v190
    %v454 = vunpack.c.l.b16 %v191
    %v455 = vunpack.c.l.b16 %v192
    %v456 = vunpack.c.l.b16 %v193
    %v457 = vunpack.c.l.b16 %v194
    %v458 = vunpack.c.l.b16 %v195
    %v459 = vunpack.c.l.b16 %v196
    %v460 = vunpack.c.l.b16 %v197
    %v461 = vunpack.c.l.b16 %v198
    %v462 = vunpack.c.l.b16 %v199
    %v463 = vunpack.c.l.b16 %v200
    %v464 = vunpack.c.l.b16 %v201
    %v465 = vunpack.c.l.b16 %v202
    %v466 = vunpack.c.l.b16 %v203
    %v467 = vunpack.c.l.b16 %v204
    %v468 = vunpack.c.l.b16 %v205
    %v469 = vunpack.c.l.b16 %v206
    %v470 = vunpack.c.l.b16 %v207
    %v471 = vunpack.c.l.b16 %v208
    %v472 = vunpack.c.l.b16 %v209
    %v473 = vunpack.c.l.b16 %v210
    %v474 = vunpack.c.l.b16 %v211
    %v475 = vunpack.c.l.b16 %v212
    %v476 = vunpack.c.l.b16 %v213
    %v477 = vunpack.c.l.b16 %v214
    %v478 = vunpack.c.l.b16 %v215
    %v479 = vunpack.c.l.b16 %v216
    %v480 = vunpack.c.l.b16 %v217
    %v481 = vunpack.c.l.b16 %v218
    %v482 = vunpack.c.l.b16 %v219
    %v483 = vunpack.c.l.b16 %v220
    %v484 = vunpack.c.l.b16 %v221
    %v485 = vunpack.c.l.b16 %v222
    %v486 = vunpack.c.l.b16 %v223
    %v487 = vunpack.c.l.b16 %v224
    %v488 = vunpack.c.l.b16 %v225
    %v489 = vunpack.c.l.b16 %v226
    %v490 = vunpack.c.l.b16 %v227
    %v491 = vunpack.c.l.b16 %v228
    %v492 = vunpack.c.l.b16 %v229
    %v493 = vunpack.c.l.b16 %v230
    %v494 = vunpack.c.l.b16 %v231
    %v495 = vunpack.c.l.b16 %v232
    %v496 = vunpack.c.l.b16 %v233
    %v497 = vunpack.c.l.b16 %v234
    %v498 = vunpack.c.l.b16 %v235
    %v499 = vunpack.c.l.b16 %v236
    %v500 = vunpack.c.l.b16 %v237
    %v501 = vunpack.c.l.b16 %v238
    %v502 = vunpack.c.l.b16 %v239
    %v503 = vunpack.c.l.b16 %v240
    %v504 = vunpack.c.l.b16 %v241
    %v505 = vunpack.c.l.b16 %v242
    %v506 = vunpack.c.l.b16 %v243
    %v507 = vunpack.c.l.b16 %v244
    %v508 = vunpack.c.l.b16 %v245
    %v509 = vunpack.c.l.b16 %v246
    %v510 = vunpack.c.l.b16 %v247
    %v511 = vunpack.c.l.b16 %v248
    %v512 = vunpack.c.l.b16 %v249
    %v513 = vunpack.c.l.b16 %v250
    %v514 = vunpack.c.l.b16 %v251
    %v515 = vunpack.c.l.b16 %v252
    %v516 = vunpack.c.l.b16 %v253
    %v517 = vunpack.c.l.b16 %v254
    %v518 = vunpack.c.l.b16 %v255
    %v519 = vunpack.c.l.b16 %v256
    %v520 = vunpack.c.l.b16 %v257
    %v521 = vunpack.c.l.b16 %v258
    %v522 = vunpack.c.l.b16 %v259
    %v523 = vunpack.c.l.b16 %v260
    %v524 = vunpack.c.l.b16 %v261
    %v525 = vunpack.c.l.b16 %v262
    %v526 = vunpack.c.l.b16 %v263
    %v527 = vunpack.c.l.b16 %v264
    %v528 = vunpack.c.l.b16 %v265
    %v529 = vunpack.c.l.b16 %v266
    %v530 = vunpack.c.l.b16 %v267
    %v531 = vunpack.c.l.b16 %v268
    %v532 = vunpack.c.l.b16 %v269
    %v533 = vunpack.c.l.b16 %v270
    %v534 = vunpack.c.l.b16 %v271
    %v535 = vunpack.c.l.b16 %v272
    %v536 = vunpack.c.l.b16 %v273
    %v537 = vunpack.c.l.b16 %v274
    %v538 = vunpack.c.l.b16 %v275
    %v539 = vunpack.c.l.b16 %v276
    %v540 = vunpack.c.l.b16 %v277
    %v541 = vunpack.c.l.b16 %v278
    %v542 = vunpack.c.l.b16 %v279
    %v543 = vunpack.c.l.b16 %v280
    %v544 = vunpack.c.l.b16 %v281
    %v545 = vunpack.c.l.b16 %v282
    %v546 = vunpack.c.l.b16 %v283
    %v547 = vunpack.c.l.b16 %v284
    %v548 = vunpack.c.l.b16 %v285
    %v549 = vunpack.c.l.b16 %v286
    %v550 = vunpack.c.l.b16 %v287
    %v551 = vunpack.c.l.b16 %v288
    %v552 = vunpack.c.l.b16 %v289
    %v553 = vunpack.c.l.b16 %v290
    %v554 = vunpack.c.l.b16 %v291
    %v555 = vunpack.c.l.b16 %v292
    %v556 = vunpack.c.l.b16 %v293
    %v557 = vunpack.c.l.b16 %v294
    %v558 = vpack.c.b16 %v431, %v430
    %v559 = vpack.c.b16 %v433, %v432
    %v560 = vpack.c.b16 %v435, %v434
    %v561 = vpack.c.b16 %v437, %v436
    %v562 = vpack.c.b16 %v439, %v438
    %v563 = vpack.c.b16 %v441, %v440
    %v564 = vpack.c.b16 %v443, %v442
    %v565 = vpack.c.b16 %v445, %v444
    %v566 = vpack.c.b16 %v447, %v446
    %v567 = vpack.c.b16 %v449, %v448
    %v568 = vpack.c.b16 %v451, %v450
    %v569 = vpack.c.b16 %v453, %v452
    %v570 = vpack.c.b16 %v455, %v454
    %v571 = vpack.c.b16 %v457, %v456
    %v572 = vpack.c.b16 %v459, %v458
    %v573 = vpack.c.b16 %v461, %v460
    %v574 = vpack.c.b16 %v463, %v462
    %v575 = vpack.c.b16 %v465, %v464
    %v576 = vpack.c.b16 %v467, %v466
    %v577 = vpack.c.b16 %v469, %v468
    %v578 = vpack.c.b16 %v471, %v470
    %v579 = vpack.c.b16 %v473, %v472
    %v580 = vpack.c.b16 %v475, %v474
    %v581 = vpack.c.b16 %v477, %v476
    %v582 = vpack.c.b16 %v479, %v478
    %v583 = vpack.c.b16 %v481, %v480
    %v584 = vpack.c.b16 %v483, %v482
    %v585 = vpack.c.b16 %v485, %v484
    %v586 = vpack.c.b16 %v487, %v486
    %v587 = vpack.c.b16 %v489, %v488
    %v588 = vpack.c.b16 %v491, %v490
    %v589 = vpack.c.b16 %v493, %v492
    %v590 = vpack.c.b16 %v495, %v494
    %v591 = vpack.c.b16 %v497, %v496
    %v592 = vpack.c.b16 %v499, %v498
    %v593 = vpack.c.b16 %v501, %v500
    %v594 = vpack.c.b16 %v503, %v502
    %v595 = vpack.c.b16 %v505, %v504
    %v596 = vpack.c.b16 %v507, %v506
    %v597 = vpack.c.b16 %v509, %v508
    %v598 = vpack.c.b16 %v511, %v510
    %v599 = vpack.c.b16 %v513, %v512
    %v600 = vpack.c.b16 %v515, %v514
    %v601 = vpack.c.b16 %v517, %v516
    %v602 = vpack.c.b16 %v519, %v518
    %v603 = vpack.c.b16 %v521, %v520
    %v604 = vpack.c.b16 %v523, %v522
    %v605 = vpack.c.b16 %v525, %v524
    %v606 = vpack.c.b16 %v527, %v526
    %v607 = vpack.c.b16 %v529, %v528
    %v608 = vpack.c.b16 %v531, %v530
    %v609 = vpack.c.b16 %v533, %v532
    %v610 = vpack.c.b16 %v535, %v534
    %v611 = vpack.c.b16 %v537, %v536
    %v612 = vpack.c.b16 %v539, %v538
    %v613 = vpack.c.b16 %v541, %v540
    %v614 = vpack.c.b16 %v543, %v542
    %v615 = vpack.c.b16 %v545, %v544
    %v616 = vpack.c.b16 %v547, %v546
    %v617 = vpack.c.b16 %v549, %v548
    %v618 = vpack.c.b16 %v551, %v550
    %v619 = vpack.c.b16 %v553, %v552
    %v620 = vpack.c.b16 %v555, %v554
    %v621 = vpack.c.b16 %v557, %v556
    %686 = vmatprep.subr.bf16.mxu0 0
    %687 = vmatpush1.bf16.msra.mxu0 %v558
    %688 = vmatprep.subr.bf16.mxu0 0
    %689 = vmatpush1.bf16.msra.mxu0 %v559
    %690 = vmatprep.subr.bf16.mxu0 0
    %691 = vmatpush1.bf16.msra.mxu0 %v560
    %692 = vmatprep.subr.bf16.mxu0 0
    %693 = vmatpush1.bf16.msra.mxu0 %v561
    %694 = vmatprep.subr.bf16.mxu0 0
    %695 = vmatpush1.bf16.msra.mxu0 %v562
    %696 = vmatprep.subr.bf16.mxu0 0
    %697 = vmatpush1.bf16.msra.mxu0 %v563
    %698 = vmatprep.subr.bf16.mxu0 0
    %699 = vmatpush1.bf16.msra.mxu0 %v564
    %700 = vmatprep.subr.bf16.mxu0 0
    %701 = vmatpush1.bf16.msra.mxu0 %v565
    %702 = vmatprep.subr.bf16.mxu0 0
    %703 = vmatpush1.bf16.msra.mxu0 %v566
    %704 = vmatprep.subr.bf16.mxu0 0
    %705 = vmatpush1.bf16.msra.mxu0 %v567
    %706 = vmatprep.subr.bf16.mxu0 0
    %707 = vmatpush1.bf16.msra.mxu0 %v568
    %708 = vmatprep.subr.bf16.mxu0 0
    %709 = vmatpush1.bf16.msra.mxu0 %v569
    %710 = vmatprep.subr.bf16.mxu0 0
    %711 = vmatpush1.bf16.msra.mxu0 %v570
    %712 = vmatprep.subr.bf16.mxu0 0
    %713 = vmatpush1.bf16.msra.mxu0 %v571
    %714 = vmatprep.subr.bf16.mxu0 0
    %715 = vmatpush1.bf16.msra.mxu0 %v572
    %716 = vmatprep.subr.bf16.mxu0 0
    %717 = vmatpush1.bf16.msra.mxu0 %v573
    %718 = vmatprep.mubr.bf16.mxu0 %v160
    %719 = vmatmul.mubr.bf16.gmra.mrb[0].mxu0 %v159
    %v720 = vpop.f32.mrb[0].mxu0
    %v721 = vadd.f32 %v300, %v720
    %v722 = vpop.f32.mrb[0].mxu0
    %v723 = vpop.f32.mrb[0].mxu0
    %v724 = vpop.f32.mrb[0].mxu0
    %725 = vdwg.mxu0
    %726 = vmatprep.subr.bf16.mxu0 0
    %727 = vmatpush1.bf16.msra.mxu0 %v574
    %728 = vmatprep.subr.bf16.mxu0 0
    %729 = vmatpush1.bf16.msra.mxu0 %v575
    %730 = vmatprep.subr.bf16.mxu0 0
    %731 = vmatpush1.bf16.msra.mxu0 %v576
    %732 = vmatprep.subr.bf16.mxu0 0
    %733 = vmatpush1.bf16.msra.mxu0 %v577
    %734 = vmatprep.subr.bf16.mxu0 0
    %735 = vmatpush1.bf16.msra.mxu0 %v578
    %736 = vmatprep.subr.bf16.mxu0 0
    %737 = vmatpush1.bf16.msra.mxu0 %v579
    %738 = vmatprep.subr.bf16.mxu0 0
    %739 = vmatpush1.bf16.msra.mxu0 %v580
    %740 = vmatprep.subr.bf16.mxu0 0
    %741 = vmatpush1.bf16.msra.mxu0 %v581
    %742 = vmatprep.subr.bf16.mxu0 0
    %743 = vmatpush1.bf16.msra.mxu0 %v582
    %744 = vmatprep.subr.bf16.mxu0 0
    %745 = vmatpush1.bf16.msra.mxu0 %v583
    %746 = vmatprep.subr.bf16.mxu0 0
    %747 = vmatpush1.bf16.msra.mxu0 %v584
    %748 = vmatprep.subr.bf16.mxu0 0
    %749 = vmatpush1.bf16.msra.mxu0 %v585
    %750 = vmatprep.subr.bf16.mxu0 0
    %751 = vmatpush1.bf16.msra.mxu0 %v586
    %752 = vmatprep.subr.bf16.mxu0 0
    %753 = vmatpush1.bf16.msra.mxu0 %v587
    %754 = vmatprep.subr.bf16.mxu0 0
    %755 = vmatpush1.bf16.msra.mxu0 %v588
    %756 = vmatprep.subr.bf16.mxu0 0
    %757 = vmatpush1.bf16.msra.mxu0 %v589
    %758 = vmatprep.mubr.bf16.mxu0 %v162
    %759 = vmatmul.mubr.bf16.gmra.mrb[0].mxu0 %v161
    %v760 = vpop.f32.mrb[0].mxu0
    %v761 = vadd.f32 %v721, %v760
    %v762 = vpop.f32.mrb[0].mxu0
    %v763 = vpop.f32.mrb[0].mxu0
    %v764 = vpop.f32.mrb[0].mxu0
    %765 = vdwg.mxu0
    %766 = vmatprep.subr.bf16.mxu0 0
    %767 = vmatpush1.bf16.msra.mxu0 %v590
    %768 = vmatprep.subr.bf16.mxu0 0
    %769 = vmatpush1.bf16.msra.mxu0 %v591
    %770 = vmatprep.subr.bf16.mxu0 0
    %771 = vmatpush1.bf16.msra.mxu0 %v592
    %772 = vmatprep.subr.bf16.mxu0 0
    %773 = vmatpush1.bf16.msra.mxu0 %v593
    %774 = vmatprep.subr.bf16.mxu0 0
    %775 = vmatpush1.bf16.msra.mxu0 %v594
    %776 = vmatprep.subr.bf16.mxu0 0
    %777 = vmatpush1.bf16.msra.mxu0 %v595
    %778 = vmatprep.subr.bf16.mxu0 0
    %779 = vmatpush1.bf16.msra.mxu0 %v596
    %780 = vmatprep.subr.bf16.mxu0 0
    %781 = vmatpush1.bf16.msra.mxu0 %v597
    %782 = vmatprep.subr.bf16.mxu0 0
    %783 = vmatpush1.bf16.msra.mxu0 %v598
    %784 = vmatprep.subr.bf16.mxu0 0
    %785 = vmatpush1.bf16.msra.mxu0 %v599
    %786 = vmatprep.subr.bf16.mxu0 0
    %787 = vmatpush1.bf16.msra.mxu0 %v600
    %788 = vmatprep.subr.bf16.mxu0 0
    %789 = vmatpush1.bf16.msra.mxu0 %v601
    %790 = vmatprep.subr.bf16.mxu0 0
    %791 = vmatpush1.bf16.msra.mxu0 %v602
    %792 = vmatprep.subr.bf16.mxu0 0
    %793 = vmatpush1.bf16.msra.mxu0 %v603
    %794 = vmatprep.subr.bf16.mxu0 0
    %795 = vmatpush1.bf16.msra.mxu0 %v604
    %796 = vmatprep.subr.bf16.mxu0 0
    %797 = vmatpush1.bf16.msra.mxu0 %v605
    %798 = vmatprep.mubr.bf16.mxu0 %v164
    %799 = vmatmul.mubr.bf16.gmra.mrb[0].mxu0 %v163
    %v800 = vpop.f32.mrb[0].mxu0
    %v801 = vadd.f32 %v761, %v800
    %v802 = vpop.f32.mrb[0].mxu0
    %v803 = vpop.f32.mrb[0].mxu0
    %v804 = vpop.f32.mrb[0].mxu0
    %805 = vdwg.mxu0
    %806 = vmatprep.subr.bf16.mxu0 0
    %807 = vmatpush1.bf16.msra.mxu0 %v606
    %808 = vmatprep.subr.bf16.mxu0 0
    %809 = vmatpush1.bf16.msra.mxu0 %v607
    %810 = vmatprep.subr.bf16.mxu0 0
    %811 = vmatpush1.bf16.msra.mxu0 %v608
    %812 = vmatprep.subr.bf16.mxu0 0
    %813 = vmatpush1.bf16.msra.mxu0 %v609
    %814 = vmatprep.subr.bf16.mxu0 0
    %815 = vmatpush1.bf16.msra.mxu0 %v610
    %816 = vmatprep.subr.bf16.mxu0 0
    %817 = vmatpush1.bf16.msra.mxu0 %v611
    %818 = vmatprep.subr.bf16.mxu0 0
    %819 = vmatpush1.bf16.msra.mxu0 %v612
    %820 = vmatprep.subr.bf16.mxu0 0
    %821 = vmatpush1.bf16.msra.mxu0 %v613
    %822 = vmatprep.subr.bf16.mxu0 0
    %823 = vmatpush1.bf16.msra.mxu0 %v614
    %824 = vmatprep.subr.bf16.mxu0 0
    %825 = vmatpush1.bf16.msra.mxu0 %v615
    %826 = vmatprep.subr.bf16.mxu0 0
    %827 = vmatpush1.bf16.msra.mxu0 %v616
    %828 = vmatprep.subr.bf16.mxu0 0
    %829 = vmatpush1.bf16.msra.mxu0 %v617
    %830 = vmatprep.subr.bf16.mxu0 0
    %831 = vmatpush1.bf16.msra.mxu0 %v618
    %832 = vmatprep.subr.bf16.mxu0 0
    %833 = vmatpush1.bf16.msra.mxu0 %v619
    %834 = vmatprep.subr.bf16.mxu0 0
    %835 = vmatpush1.bf16.msra.mxu0 %v620
    %836 = vmatprep.subr.bf16.mxu0 0
    %837 = vmatpush1.bf16.msra.mxu0 %v621
    %838 = vmatprep.mubr.bf16.mxu0 %v166
    %839 = vmatmul.mubr.bf16.gmra.mrb[0].mxu0 %v165
    %v840 = vpop.f32.mrb[0].mxu0
    %v841 = vadd.f32 %v801, %v840
    %v842 = vpop.f32.mrb[0].mxu0
    %v843 = vpop.f32.mrb[0].mxu0
    %v844 = vpop.f32.mrb[0].mxu0
    %845 = vdwg.mxu0
    %v846 = vmax.f32 %v841, 0.0
    %v847 = vpack.c.bf16 %v846, %v846
    %v848 = vld [vmem:[#allocation7] sm:$0xff]
    %v849 = vld [vmem:[#allocation7 + $0x8] sm:$0xff]
    %v850 = vld [vmem:[#allocation7 + $0x10] sm:$0xff]
    %v851 = vld [vmem:[#allocation7 + $0x18] sm:$0xff]
    %v852 = vld [vmem:[#allocation7 + $0x20] sm:$0xff]
    %v853 = vld [vmem:[#allocation7 + $0x28] sm:$0xff]
    %v854 = vld [vmem:[#allocation7 + $0x30] sm:$0xff]
    %v855 = vld [vmem:[#allocation7 + $0x38] sm:$0xff]
    %v856 = vld [vmem:[#allocation7 + $0x40] sm:$0xff]
    %v857 = vld [vmem:[#allocation7 + $0x48] sm:$0xff]
    %v858 = vld [vmem:[#allocation7 + $0x50] sm:$0xff]
    %v859 = vld [vmem:[#allocation7 + $0x58] sm:$0xff]
    %v860 = vld [vmem:[#allocation7 + $0x60] sm:$0xff]
    %v861 = vld [vmem:[#allocation7 + $0x68] sm:$0xff]
    %v862 = vld [vmem:[#allocation7 + $0x70] sm:$0xff]
    %v863 = vld [vmem:[#allocation7 + $0x78] sm:$0xff]
    %v864 = vld [vmem:[#allocation7 + $0x80] sm:$0xff]
    %v865 = vld [vmem:[#allocation7 + $0x88] sm:$0xff]
    %v866 = vld [vmem:[#allocation7 + $0x90] sm:$0xff]
    %v867 = vld [vmem:[#allocation7 + $0x98] sm:$0xff]
    %v868 = vld [vmem:[#allocation7 + $0xa0] sm:$0xff]
    %v869 = vld [vmem:[#allocation7 + $0xa8] sm:$0xff]
    %v870 = vld [vmem:[#allocation7 + $0xb0] sm:$0xff]
    %v871 = vld [vmem:[#allocation7 + $0xb8] sm:$0xff]
    %v872 = vld [vmem:[#allocation7 + $0xc0] sm:$0xff]
    %v873 = vld [vmem:[#allocation7 + $0xc8] sm:$0xff]
    %v874 = vld [vmem:[#allocation7 + $0xd0] sm:$0xff]
    %v875 = vld [vmem:[#allocation7 + $0xd8] sm:$0xff]
    %v876 = vld [vmem:[#allocation7 + $0xe0] sm:$0xff]
    %v877 = vld [vmem:[#allocation7 + $0xe8] sm:$0xff]
    %v878 = vld [vmem:[#allocation7 + $0xf0] sm:$0xff]
    %v879 = vld [vmem:[#allocation7 + $0xf8] sm:$0xff]
    %v880 = vld [vmem:[#allocation7 + $0x100] sm:$0xff]
    %v881 = vld [vmem:[#allocation7 + $0x108] sm:$0xff]
    %v882 = vld [vmem:[#allocation7 + $0x110] sm:$0xff]
    %v883 = vld [vmem:[#allocation7 + $0x118] sm:$0xff]
    %v884 = vld [vmem:[#allocation7 + $0x120] sm:$0xff]
    %v885 = vld [vmem:[#allocation7 + $0x128] sm:$0xff]
    %v886 = vld [vmem:[#allocation7 + $0x130] sm:$0xff]
    %v887 = vld [vmem:[#allocation7 + $0x138] sm:$0xff]
    %v888 = vld [vmem:[#allocation7 + $0x140] sm:$0xff]
    %v889 = vld [vmem:[#allocation7 + $0x148] sm:$0xff]
    %v890 = vld [vmem:[#allocation7 + $0x150] sm:$0xff]
    %v891 = vld [vmem:[#allocation7 + $0x158] sm:$0xff]
    %v892 = vld [vmem:[#allocation7 + $0x160] sm:$0xff]
    %v893 = vld [vmem:[#allocation7 + $0x168] sm:$0xff]
    %v894 = vld [vmem:[#allocation7 + $0x170] sm:$0xff]
    %v895 = vld [vmem:[#allocation7 + $0x178] sm:$0xff]
    %v896 = vld [vmem:[#allocation7 + $0x180] sm:$0xff]
    %v897 = vld [vmem:[#allocation7 + $0x188] sm:$0xff]
    %v898 = vld [vmem:[#allocation7 + $0x190] sm:$0xff]
    %v899 = vld [vmem:[#allocation7 + $0x198] sm:$0xff]
    %v900 = vld [vmem:[#allocation7 + $0x1a0] sm:$0xff]
    %v901 = vld [vmem:[#allocation7 + $0x1a8] sm:$0xff]
    %v902 = vld [vmem:[#allocation7 + $0x1b0] sm:$0xff]
    %v903 = vld [vmem:[#allocation7 + $0x1b8] sm:$0xff]
    %v904 = vld [vmem:[#allocation7 + $0x1c0] sm:$0xff]
    %v905 = vld [vmem:[#allocation7 + $0x1c8] sm:$0xff]
    %v906 = vld [vmem:[#allocation7 + $0x1d0] sm:$0xff]
    %v907 = vld [vmem:[#allocation7 + $0x1d8] sm:$0xff]
    %v908 = vld [vmem:[#allocation7 + $0x1e0] sm:$0xff]
    %v909 = vld [vmem:[#allocation7 + $0x1e8] sm:$0xff]
    %v910 = vld [vmem:[#allocation7 + $0x1f0] sm:$0xff]
    %v911 = vld [vmem:[#allocation7 + $0x1f8] sm:$0xff]
    %v912 = vld [vmem:[%s4] sm:$0xff]
    %v914 = vlaneseq
    %v915 = vshrl.u32 %v914, 7
    %v916 = vsub.s32 0, %v915
    %v917 = vrot.slane %v912, %v916
    %v918 = vlaneseq
    %v919 = vshrl.u32 %v918, 7
    %v920 = vsub.s32 1, %v919
    %v921 = vrot.slane %v912, %v920
    %v922 = vlaneseq
    %v923 = vshrl.u32 %v922, 7
    %v924 = vsub.s32 2, %v923
    %v925 = vrot.slane %v912, %v924
    %v926 = vlaneseq
    %v927 = vshrl.u32 %v926, 7
    %v928 = vsub.s32 3, %v927
    %v929 = vrot.slane %v912, %v928
    %v930 = vlaneseq
    %v931 = vshrl.u32 %v930, 7
    %v932 = vsub.s32 4, %v931
    %v933 = vrot.slane %v912, %v932
    %v934 = vlaneseq
    %v935 = vshrl.u32 %v934, 7
    %v936 = vsub.s32 5, %v935
    %v937 = vrot.slane %v912, %v936
    %v938 = vlaneseq
    %v939 = vshrl.u32 %v938, 7
    %v940 = vsub.s32 6, %v939
    %v941 = vrot.slane %v912, %v940
    %v942 = vlaneseq
    %v943 = vshrl.u32 %v942, 7
    %v944 = vsub.s32 7, %v943
    %v945 = vrot.slane %v912, %v944
    %v1018 = vunpack.c.l.b16 %v848
    %v1019 = vunpack.c.h.b16 %v848
    %v1020 = vunpack.c.l.b16 %v849
    %v1021 = vunpack.c.h.b16 %v849
    %v1022 = vunpack.c.l.b16 %v850
    %v1023 = vunpack.c.h.b16 %v850
    %v1024 = vunpack.c.l.b16 %v851
    %v1025 = vunpack.c.h.b16 %v851
    %v1026 = vunpack.c.l.b16 %v852
    %v1027 = vunpack.c.h.b16 %v852
    %v1028 = vunpack.c.l.b16 %v853
    %v1029 = vunpack.c.h.b16 %v853
    %v1030 = vunpack.c.l.b16 %v854
    %v1031 = vunpack.c.h.b16 %v854
    %v1032 = vunpack.c.l.b16 %v855
    %v1033 = vunpack.c.h.b16 %v855
    %v1034 = vunpack.c.l.b16 %v856
    %v1035 = vunpack.c.h.b16 %v856
    %v1036 = vunpack.c.l.b16 %v857
    %v1037 = vunpack.c.h.b16 %v857
    %v1038 = vunpack.c.l.b16 %v858
    %v1039 = vunpack.c.h.b16 %v858
    %v1040 = vunpack.c.l.b16 %v859
    %v1041 = vunpack.c.h.b16 %v859
    %v1042 = vunpack.c.l.b16 %v860
    %v1043 = vunpack.c.h.b16 %v860
    %v1044 = vunpack.c.l.b16 %v861
    %v1045 = vunpack.c.h.b16 %v861
    %v1046 = vunpack.c.l.b16 %v862
    %v1047 = vunpack.c.h.b16 %v862
    %v1048 = vunpack.c.l.b16 %v863
    %v1049 = vunpack.c.h.b16 %v863
    %v1050 = vunpack.c.l.b16 %v864
    %v1051 = vunpack.c.h.b16 %v864
    %v1052 = vunpack.c.l.b16 %v865
    %v1053 = vunpack.c.h.b16 %v865
    %v1054 = vunpack.c.l.b16 %v866
    %v1055 = vunpack.c.h.b16 %v866
    %v1056 = vunpack.c.l.b16 %v867
    %v1057 = vunpack.c.h.b16 %v867
    %v1058 = vunpack.c.l.b16 %v868
    %v1059 = vunpack.c.h.b16 %v868
    %v1060 = vunpack.c.l.b16 %v869
    %v1061 = vunpack.c.h.b16 %v869
    %v1062 = vunpack.c.l.b16 %v870
    %v1063 = vunpack.c.h.b16 %v870
    %v1064 = vunpack.c.l.b16 %v871
    %v1065 = vunpack.c.h.b16 %v871
    %v1066 = vunpack.c.l.b16 %v872
    %v1067 = vunpack.c.h.b16 %v872
    %v1068 = vunpack.c.l.b16 %v873
    %v1069 = vunpack.c.h.b16 %v873
    %v1070 = vunpack.c.l.b16 %v874
    %v1071 = vunpack.c.h.b16 %v874
    %v1072 = vunpack.c.l.b16 %v875
    %v1073 = vunpack.c.h.b16 %v875
    %v1074 = vunpack.c.l.b16 %v876
    %v1075 = vunpack.c.h.b16 %v876
    %v1076 = vunpack.c.l.b16 %v877
    %v1077 = vunpack.c.h.b16 %v877
    %v1078 = vunpack.c.l.b16 %v878
    %v1079 = vunpack.c.h.b16 %v878
    %v1080 = vunpack.c.l.b16 %v879
    %v1081 = vunpack.c.h.b16 %v879
    %v1082 = vunpack.c.l.b16 %v880
    %v1083 = vunpack.c.h.b16 %v880
    %v1084 = vunpack.c.l.b16 %v881
    %v1085 = vunpack.c.h.b16 %v881
    %v1086 = vunpack.c.l.b16 %v882
    %v1087 = vunpack.c.h.b16 %v882
    %v1088 = vunpack.c.l.b16 %v883
    %v1089 = vunpack.c.h.b16 %v883
    %v1090 = vunpack.c.l.b16 %v884
    %v1091 = vunpack.c.h.b16 %v884
    %v1092 = vunpack.c.l.b16 %v885
    %v1093 = vunpack.c.h.b16 %v885
    %v1094 = vunpack.c.l.b16 %v886
    %v1095 = vunpack.c.h.b16 %v886
    %v1096 = vunpack.c.l.b16 %v887
    %v1097 = vunpack.c.h.b16 %v887
    %v1098 = vunpack.c.l.b16 %v888
    %v1099 = vunpack.c.h.b16 %v888
    %v1100 = vunpack.c.l.b16 %v889
    %v1101 = vunpack.c.h.b16 %v889
    %v1102 = vunpack.c.l.b16 %v890
    %v1103 = vunpack.c.h.b16 %v890
    %v1104 = vunpack.c.l.b16 %v891
    %v1105 = vunpack.c.h.b16 %v891
    %v1106 = vunpack.c.l.b16 %v892
    %v1107 = vunpack.c.h.b16 %v892
    %v1108 = vunpack.c.l.b16 %v893
    %v1109 = vunpack.c.h.b16 %v893
    %v1110 = vunpack.c.l.b16 %v894
    %v1111 = vunpack.c.h.b16 %v894
    %v1112 = vunpack.c.l.b16 %v895
    %v1113 = vunpack.c.h.b16 %v895
    %v1114 = vunpack.c.l.b16 %v896
    %v1115 = vunpack.c.h.b16 %v896
    %v1116 = vunpack.c.l.b16 %v897
    %v1117 = vunpack.c.h.b16 %v897
    %v1118 = vunpack.c.l.b16 %v898
    %v1119 = vunpack.c.h.b16 %v898
    %v1120 = vunpack.c.l.b16 %v899
    %v1121 = vunpack.c.h.b16 %v899
    %v1122 = vunpack.c.l.b16 %v900
    %v1123 = vunpack.c.h.b16 %v900
    %v1124 = vunpack.c.l.b16 %v901
    %v1125 = vunpack.c.h.b16 %v901
    %v1126 = vunpack.c.l.b16 %v902
    %v1127 = vunpack.c.h.b16 %v902
    %v1128 = vunpack.c.l.b16 %v903
    %v1129 = vunpack.c.h.b16 %v903
    %v1130 = vunpack.c.l.b16 %v904
    %v1131 = vunpack.c.h.b16 %v904
    %v1132 = vunpack.c.l.b16 %v905
    %v1133 = vunpack.c.h.b16 %v905
    %v1134 = vunpack.c.l.b16 %v906
    %v1135 = vunpack.c.h.b16 %v906
    %v1136 = vunpack.c.l.b16 %v907
    %v1137 = vunpack.c.h.b16 %v907
    %v1138 = vunpack.c.l.b16 %v908
    %v1139 = vunpack.c.h.b16 %v908
    %v1140 = vunpack.c.l.b16 %v909
    %v1141 = vunpack.c.h.b16 %v909
    %v1142 = vunpack.c.l.b16 %v910
    %v1143 = vunpack.c.h.b16 %v910
    %v1144 = vunpack.c.l.b16 %v911
    %v1145 = vunpack.c.h.b16 %v911
    %v1146 = vpack.c.b16 %v1026, %v1018
    %v1147 = vpack.c.b16 %v1027, %v1019
    %v1148 = vpack.c.b16 %v1028, %v1020
    %v1149 = vpack.c.b16 %v1029, %v1021
    %v1150 = vpack.c.b16 %v1030, %v1022
    %v1151 = vpack.c.b16 %v1031, %v1023
    %v1152 = vpack.c.b16 %v1032, %v1024
    %v1153 = vpack.c.b16 %v1033, %v1025
    %v1154 = vpack.c.b16 %v1042, %v1034
    %v1155 = vpack.c.b16 %v1043, %v1035
    %v1156 = vpack.c.b16 %v1044, %v1036
    %v1157 = vpack.c.b16 %v1045, %v1037
    %v1158 = vpack.c.b16 %v1046, %v1038
    %v1159 = vpack.c.b16 %v1047, %v1039
    %v1160 = vpack.c.b16 %v1048, %v1040
    %v1161 = vpack.c.b16 %v1049, %v1041
    %v1162 = vpack.c.b16 %v1058, %v1050
    %v1163 = vpack.c.b16 %v1059, %v1051
    %v1164 = vpack.c.b16 %v1060, %v1052
    %v1165 = vpack.c.b16 %v1061, %v1053
    %v1166 = vpack.c.b16 %v1062, %v1054
    %v1167 = vpack.c.b16 %v1063, %v1055
    %v1168 = vpack.c.b16 %v1064, %v1056
    %v1169 = vpack.c.b16 %v1065, %v1057
    %v1170 = vpack.c.b16 %v1074, %v1066
    %v1171 = vpack.c.b16 %v1075, %v1067
    %v1172 = vpack.c.b16 %v1076, %v1068
    %v1173 = vpack.c.b16 %v1077, %v1069
    %v1174 = vpack.c.b16 %v1078, %v1070
    %v1175 = vpack.c.b16 %v1079, %v1071
    %v1176 = vpack.c.b16 %v1080, %v1072
    %v1177 = vpack.c.b16 %v1081, %v1073
    %v1178 = vpack.c.b16 %v1090, %v1082
    %v1179 = vpack.c.b16 %v1091, %v1083
    %v1180 = vpack.c.b16 %v1092, %v1084
    %v1181 = vpack.c.b16 %v1093, %v1085
    %v1182 = vpack.c.b16 %v1094, %v1086
    %v1183 = vpack.c.b16 %v1095, %v1087
    %v1184 = vpack.c.b16 %v1096, %v1088
    %v1185 = vpack.c.b16 %v1097, %v1089
    %v1186 = vpack.c.b16 %v1106, %v1098
    %v1187 = vpack.c.b16 %v1107, %v1099
    %v1188 = vpack.c.b16 %v1108, %v1100
    %v1189 = vpack.c.b16 %v1109, %v1101
    %v1190 = vpack.c.b16 %v1110, %v1102
    %v1191 = vpack.c.b16 %v1111, %v1103
    %v1192 = vpack.c.b16 %v1112, %v1104
    %v1193 = vpack.c.b16 %v1113, %v1105
    %v1194 = vpack.c.b16 %v1122, %v1114
    %v1195 = vpack.c.b16 %v1123, %v1115
    %v1196 = vpack.c.b16 %v1124, %v1116
    %v1197 = vpack.c.b16 %v1125, %v1117
    %v1198 = vpack.c.b16 %v1126, %v1118
    %v1199 = vpack.c.b16 %v1127, %v1119
    %v1200 = vpack.c.b16 %v1128, %v1120
    %v1201 = vpack.c.b16 %v1129, %v1121
    %v1202 = vpack.c.b16 %v1138, %v1130
    %v1203 = vpack.c.b16 %v1139, %v1131
    %v1204 = vpack.c.b16 %v1140, %v1132
    %v1205 = vpack.c.b16 %v1141, %v1133
    %v1206 = vpack.c.b16 %v1142, %v1134
    %v1207 = vpack.c.b16 %v1143, %v1135
    %v1208 = vpack.c.b16 %v1144, %v1136
    %v1209 = vpack.c.b16 %v1145, %v1137
    %1274 = vmatprep.subr.bf16.mxu0 %v1147
    %1275 = vmatpush1.bf16.msra.mxu0 %v1146
    %1276 = vmatprep.subr.bf16.mxu0 %v1155
    %1277 = vmatpush1.bf16.msra.mxu0 %v1154
    %1278 = vmatprep.subr.bf16.mxu0 %v1163
    %1279 = vmatpush1.bf16.msra.mxu0 %v1162
    %1280 = vmatprep.subr.bf16.mxu0 %v1171
    %1281 = vmatpush1.bf16.msra.mxu0 %v1170
    %1282 = vmatprep.subr.bf16.mxu0 %v1179
    %1283 = vmatpush1.bf16.msra.mxu0 %v1178
    %1284 = vmatprep.subr.bf16.mxu0 %v1187
    %1285 = vmatpush1.bf16.msra.mxu0 %v1186
    %1286 = vmatprep.subr.bf16.mxu0 %v1195
    %1287 = vmatpush1.bf16.msra.mxu0 %v1194
    %1288 = vmatprep.subr.bf16.mxu0 %v1203
    %1289 = vmatpush1.bf16.msra.mxu0 %v1202
    %1290 = vmatprep.subr.bf16.mxu0 0
    %1291 = vmatpush1.bf16.msra.mxu0 0
    %1292 = vmatprep.subr.bf16.mxu0 0
    %1293 = vmatpush1.bf16.msra.mxu0 0
    %1294 = vmatprep.subr.bf16.mxu0 0
    %1295 = vmatpush1.bf16.msra.mxu0 0
    %1296 = vmatprep.subr.bf16.mxu0 0
    %1297 = vmatpush1.bf16.msra.mxu0 0
    %1298 = vmatprep.subr.bf16.mxu0 0
    %1299 = vmatpush1.bf16.msra.mxu0 0
    %1300 = vmatprep.subr.bf16.mxu0 0
    %1301 = vmatpush1.bf16.msra.mxu0 0
    %1302 = vmatprep.subr.bf16.mxu0 0
    %1303 = vmatpush1.bf16.msra.mxu0 0
    %1304 = vmatprep.subr.bf16.mxu0 0
    %1305 = vmatpush1.bf16.msra.mxu0 0
    %1306 = vmatprep.mubr.bf16.mxu0 0
    %1307 = vmatmul.mubr.bf16.gmra.mrb[0].mxu0 %v847
    %v1308 = vpop.f32.mrb[0].mxu0
    %v1309 = vadd.f32 %v917, %v1308
    %v1310 = vpop.f32.mrb[0].mxu0
    %v1311 = vadd.f32 %v921, %v1310
    %v1312 = vpop.f32.mrb[0].mxu0
    %v1313 = vpop.f32.mrb[0].mxu0
    %1314 = vdwg.mxu0
    %1315 = vmatprep.subr.bf16.mxu0 %v1149
    %1316 = vmatpush1.bf16.msra.mxu0 %v1148
    %1317 = vmatprep.subr.bf16.mxu0 %v1157
    %1318 = vmatpush1.bf16.msra.mxu0 %v1156
    %1319 = vmatprep.subr.bf16.mxu0 %v1165
    %1320 = vmatpush1.bf16.msra.mxu0 %v1164
    %1321 = vmatprep.subr.bf16.mxu0 %v1173
    %1322 = vmatpush1.bf16.msra.mxu0 %v1172
    %1323 = vmatprep.subr.bf16.mxu0 %v1181
    %1324 = vmatpush1.bf16.msra.mxu0 %v1180
    %1325 = vmatprep.subr.bf16.mxu0 %v1189
    %1326 = vmatpush1.bf16.msra.mxu0 %v1188
    %1327 = vmatprep.subr.bf16.mxu0 %v1197
    %1328 = vmatpush1.bf16.msra.mxu0 %v1196
    %1329 = vmatprep.subr.bf16.mxu0 %v1205
    %1330 = vmatpush1.bf16.msra.mxu0 %v1204
    %1331 = vmatprep.subr.bf16.mxu0 0
    %1332 = vmatpush1.bf16.msra.mxu0 0
    %1333 = vmatprep.subr.bf16.mxu0 0
    %1334 = vmatpush1.bf16.msra.mxu0 0
    %1335 = vmatprep.subr.bf16.mxu0 0
    %1336 = vmatpush1.bf16.msra.mxu0 0
    %1337 = vmatprep.subr.bf16.mxu0 0
    %1338 = vmatpush1.bf16.msra.mxu0 0
    %1339 = vmatprep.subr.bf16.mxu0 0
    %1340 = vmatpush1.bf16.msra.mxu0 0
    %1341 = vmatprep.subr.bf16.mxu0 0
    %1342 = vmatpush1.bf16.msra.mxu0 0
    %1343 = vmatprep.subr.bf16.mxu0 0
    %1344 = vmatpush1.bf16.msra.mxu0 0
    %1345 = vmatprep.subr.bf16.mxu0 0
    %1346 = vmatpush1.bf16.msra.mxu0 0
    %1347 = vmatprep.mubr.bf16.mxu0 0
    %1348 = vmatmul.mubr.bf16.gmra.mrb[0].mxu0 %v847
    %v1349 = vpop.f32.mrb[0].mxu0
    %v1350 = vadd.f32 %v925, %v1349
    %v1351 = vpop.f32.mrb[0].mxu0
    %v1352 = vadd.f32 %v929, %v1351
    %v1353 = vpop.f32.mrb[0].mxu0
    %v1354 = vpop.f32.mrb[0].mxu0
    %1355 = vdwg.mxu0
    %1356 = vmatprep.subr.bf16.mxu0 %v1151
    %1357 = vmatpush1.bf16.msra.mxu0 %v1150
    %1358 = vmatprep.subr.bf16.mxu0 %v1159
    %1359 = vmatpush1.bf16.msra.mxu0 %v1158
    %1360 = vmatprep.subr.bf16.mxu0 %v1167
    %1361 = vmatpush1.bf16.msra.mxu0 %v1166
    %1362 = vmatprep.subr.bf16.mxu0 %v1175
    %1363 = vmatpush1.bf16.msra.mxu0 %v1174
    %1364 = vmatprep.subr.bf16.mxu0 %v1183
    %1365 = vmatpush1.bf16.msra.mxu0 %v1182
    %1366 = vmatprep.subr.bf16.mxu0 %v1191
    %1367 = vmatpush1.bf16.msra.mxu0 %v1190
    %1368 = vmatprep.subr.bf16.mxu0 %v1199
    %1369 = vmatpush1.bf16.msra.mxu0 %v1198
    %1370 = vmatprep.subr.bf16.mxu0 %v1207
    %1371 = vmatpush1.bf16.msra.mxu0 %v1206
    %1372 = vmatprep.subr.bf16.mxu0 0
    %1373 = vmatpush1.bf16.msra.mxu0 0
    %1374 = vmatprep.subr.bf16.mxu0 0
    %1375 = vmatpush1.bf16.msra.mxu0 0
    %1376 = vmatprep.subr.bf16.mxu0 0
    %1377 = vmatpush1.bf16.msra.mxu0 0
    %1378 = vmatprep.subr.bf16.mxu0 0
    %1379 = vmatpush1.bf16.msra.mxu0 0
    %1380 = vmatprep.subr.bf16.mxu0 0
    %1381 = vmatpush1.bf16.msra.mxu0 0
    %1382 = vmatprep.subr.bf16.mxu0 0
    %1383 = vmatpush1.bf16.msra.mxu0 0
    %1384 = vmatprep.subr.bf16.mxu0 0
    %1385 = vmatpush1.bf16.msra.mxu0 0
    %1386 = vmatprep.subr.bf16.mxu0 0
    %1387 = vmatpush1.bf16.msra.mxu0 0
    %1388 = vmatprep.mubr.bf16.mxu0 0
    %1389 = vmatmul.mubr.bf16.gmra.mrb[0].mxu0 %v847
    %v1390 = vpop.f32.mrb[0].mxu0
    %v1391 = vadd.f32 %v933, %v1390
    %v1392 = vpop.f32.mrb[0].mxu0
    %v1393 = vadd.f32 %v937, %v1392
    %v1394 = vpop.f32.mrb[0].mxu0
    %v1395 = vpop.f32.mrb[0].mxu0
    %1396 = vdwg.mxu0
    %1397 = vmatprep.subr.bf16.mxu0 %v1153
    %1398 = vmatpush1.bf16.msra.mxu0 %v1152
    %1399 = vmatprep.subr.bf16.mxu0 %v1161
    %1400 = vmatpush1.bf16.msra.mxu0 %v1160
    %1401 = vmatprep.subr.bf16.mxu0 %v1169
    %1402 = vmatpush1.bf16.msra.mxu0 %v1168
    %1403 = vmatprep.subr.bf16.mxu0 %v1177
    %1404 = vmatpush1.bf16.msra.mxu0 %v1176
    %1405 = vmatprep.subr.bf16.mxu0 %v1185
    %1406 = vmatpush1.bf16.msra.mxu0 %v1184
    %1407 = vmatprep.subr.bf16.mxu0 %v1193
    %1408 = vmatpush1.bf16.msra.mxu0 %v1192
    %1409 = vmatprep.subr.bf16.mxu0 %v1201
    %1410 = vmatpush1.bf16.msra.mxu0 %v1200
    %1411 = vmatprep.subr.bf16.mxu0 %v1209
    %1412 = vmatpush1.bf16.msra.mxu0 %v1208
    %1413 = vmatprep.subr.bf16.mxu0 0
    %1414 = vmatpush1.bf16.msra.mxu0 0
    %1415 = vmatprep.subr.bf16.mxu0 0
    %1416 = vmatpush1.bf16.msra.mxu0 0
    %1417 = vmatprep.subr.bf16.mxu0 0
    %1418 = vmatpush1.bf16.msra.mxu0 0
    %1419 = vmatprep.subr.bf16.mxu0 0
    %1420 = vmatpush1.bf16.msra.mxu0 0
    %1421 = vmatprep.subr.bf16.mxu0 0
    %1422 = vmatpush1.bf16.msra.mxu0 0
    %1423 = vmatprep.subr.bf16.mxu0 0
    %1424 = vmatpush1.bf16.msra.mxu0 0
    %1425 = vmatprep.subr.bf16.mxu0 0
    %1426 = vmatpush1.bf16.msra.mxu0 0
    %1427 = vmatprep.subr.bf16.mxu0 0
    %1428 = vmatpush1.bf16.msra.mxu0 0
    %1429 = vmatprep.mubr.bf16.mxu0 0
    %1430 = vmatmul.mubr.bf16.gmra.mrb[0].mxu0 %v847
    %v1431 = vpop.f32.mrb[0].mxu0
    %v1432 = vadd.f32 %v941, %v1431
    %v1433 = vpop.f32.mrb[0].mxu0
    %v1434 = vadd.f32 %v945, %v1433
    %v1435 = vpop.f32.mrb[0].mxu0
    %v1436 = vpop.f32.mrb[0].mxu0
    %1437 = vdwg.mxu0
    %v1438 = vsub.f32 0.0, %v1309
    %v1439 = vsub.f32 0.0, %v1311
    %v1440 = vsub.f32 0.0, %v1350
    %v1441 = vsub.f32 0.0, %v1352
    %v1442 = vsub.f32 0.0, %v1391
    %v1443 = vsub.f32 0.0, %v1393
    %v1444 = vsub.f32 0.0, %v1432
    %v1445 = vsub.f32 0.0, %v1434
    %v1446 = vmul.f32 %v1438, 1.442695
    %v1447 = vpow.pop %v1446
    %v1448 = vmul.f32 %v1439, 1.442695
    %v1449 = vpow.pop %v1448
    %v1450 = vmul.f32 %v1440, 1.442695
    %v1451 = vpow.pop %v1450
    %v1452 = vmul.f32 %v1441, 1.442695
    %v1453 = vpow.pop %v1452
    %v1454 = vmul.f32 %v1442, 1.442695
    %v1455 = vpow.pop %v1454
    %v1456 = vmul.f32 %v1443, 1.442695
    %v1457 = vpow.pop %v1456
    %v1458 = vmul.f32 %v1444, 1.442695
    %v1459 = vpow.pop %v1458
    %v1460 = vmul.f32 %v1445, 1.442695
    %v1461 = vpow.pop %v1460
    %v1462 = vadd.f32 %v1447, 1.0
    %v1463 = vadd.f32 %v1449, 1.0
    %v1464 = vadd.f32 %v1451, 1.0
    %v1465 = vadd.f32 %v1453, 1.0
    %v1466 = vadd.f32 %v1455, 1.0
    %v1467 = vadd.f32 %v1457, 1.0
    %v1468 = vadd.f32 %v1459, 1.0
    %v1469 = vadd.f32 %v1461, 1.0
    %v1470 = vrcp.pop %v1462
    %v1471 = vrcp.pop %v1463
    %v1472 = vrcp.pop %v1464
    %v1473 = vrcp.pop %v1465
    %v1474 = vrcp.pop %v1466
    %v1475 = vrcp.pop %v1467
    %v1476 = vrcp.pop %v1468
    %v1477 = vrcp.pop %v1469
    %v1478 = vpack.c.bf16 %v1470, %v1470
    %v1479 = vpack.c.bf16 %v1471, %v1471
    %v1480 = vpack.c.bf16 %v1472, %v1472
    %v1481 = vpack.c.bf16 %v1473, %v1473
    %v1482 = vpack.c.bf16 %v1474, %v1474
    %v1483 = vpack.c.bf16 %v1475, %v1475
    %v1484 = vpack.c.bf16 %v1476, %v1476
    %v1485 = vpack.c.bf16 %v1477, %v1477
    %v1494 = vcombine.low %v1478, %v1479
    %v1495 = vcombine.low %v1480, %v1481
    %v1496 = vcombine.low %v1482, %v1483
    %v1497 = vcombine.low %v1484, %v1485
    %v1499 = vunpack.c.l.s4 1966171168
    %v1500 = vunpack.c.0.s8 %v1499
    %v1501 = vlaneseq
    %v1502 = vshrl.u32 %v1501, 7
    %v1503 = vsub.s32 %v1500, %v1502
    %v1504 = vrot.slane %v1494, %v1503
    %v1506 = vunpack.c.l.s4 1966171168
    %v1507 = vunpack.c.0.s8 %v1506
    %v1508 = vlaneseq
    %v1509 = vshrl.u32 %v1508, 7
    %v1510 = vsub.s32 %v1507, %v1509
    %v1511 = vrot.slane %v1495, %v1510
    %v1513 = vunpack.c.l.s4 1966171168
    %v1514 = vunpack.c.0.s8 %v1513
    %v1515 = vlaneseq
    %v1516 = vshrl.u32 %v1515, 7
    %v1517 = vsub.s32 %v1514, %v1516
    %v1518 = vrot.slane %v1496, %v1517
    %v1520 = vunpack.c.l.s4 1966171168
    %v1521 = vunpack.c.0.s8 %v1520
    %v1522 = vlaneseq
    %v1523 = vshrl.u32 %v1522, 7
    %v1524 = vsub.s32 %v1521, %v1523
    %v1525 = vrot.slane %v1497, %v1524
    %v1526 = vcombine.low %v1504, %v1511
    %v1527 = vcombine.high %v1504, %v1511
    %v1528 = vcombine.low %v1518, %v1525
    %v1529 = vcombine.high %v1518, %v1525
    %v1531 = vunpack.c.l.s4 1966171168
    %v1532 = vunpack.c.0.s8 %v1531
    %v1533 = vlaneseq
    %v1534 = vshrl.u32 %v1533, 7
    %v1535 = vsub.s32 %v1532, %v1534
    %v1536 = vrot.slane %v1526, %v1535
    %v1538 = vunpack.c.l.s4 1966171168
    %v1539 = vunpack.c.0.s8 %v1538
    %v1540 = vlaneseq
    %v1541 = vshrl.u32 %v1540, 7
    %v1542 = vsub.s32 %v1539, %v1541
    %v1543 = vrot.slane %v1527, %v1542
    %v1545 = vunpack.c.l.s4 1966171168
    %v1546 = vunpack.c.0.s8 %v1545
    %v1547 = vlaneseq
    %v1548 = vshrl.u32 %v1547, 7
    %v1549 = vsub.s32 %v1546, %v1548
    %v1550 = vrot.slane %v1528, %v1549
    %v1552 = vunpack.c.l.s4 1966171168
    %v1553 = vunpack.c.0.s8 %v1552
    %v1554 = vlaneseq
    %v1555 = vshrl.u32 %v1554, 7
    %v1556 = vsub.s32 %v1553, %v1555
    %v1557 = vrot.slane %v1529, %v1556
    %v1558 = vcombine.low %v1536, %v1550
    %v1559 = vcombine.high %v1536, %v1550
    %v1560 = vcombine.low %v1543, %v1557
    %v1561 = vcombine.high %v1543, %v1557
    %1566 = vst [vmem:[#allocation8] sm:$0xff] %v1558
    %1567 = vst [vmem:[#allocation8 + $0x8] sm:$0xff] %v1560
    %1568 = vst [vmem:[#allocation8 + $0x10] sm:$0xff] %v1559
    %1569 = vst [vmem:[#allocation8 + $0x18] sm:$0xff] %v1561
    // Predicated region
    $region34: #{tpu_custom_call.1} parent=1 // pred_check
      _
    $region35: #{tpu_custom_call.1} parent=1 // pred_check_branch
      %1571 = sbr.rel (0) target = $region37
    $region36: #{tpu_custom_call.1} parent=1 // pred_region
      %s1573 = ssub.s32 512, 128
      %1574 = vsyncadd [#allocation4], %s1573
      %s1575 = sshll.u32 [#allocation8], 4
      %s1576 = int_to_ptr.vmem [resolvable:$true] %s1575
      %1581 = dma.vmem_to_hbm [thread:$0]  %s1576, 128, %s5, [#allocation4], 128, 128, 8
    $region37: #{tpu_custom_call.1} parent=1 // pred_fallthru
      _
    // Predicated region
    $region38: #{tpu_custom_call.1} parent=1 // pred_check
      _
    $region39: #{tpu_custom_call.1} parent=1 // pred_check_branch
      %1583 = sbr.rel (0) target = $region41
    $region40: #{tpu_custom_call.1} parent=1 // pred_region
      %1584 = dma.done [#allocation4], 512
    $region41: #{tpu_custom_call.1} parent=1 // pred_fallthru
      _
    %1585 = vsyncpa [#allocation3], 1
    %1586 = vsyncpa [#allocation6], 1
    %1587 = vsyncpa [#allocation4], 1

</llo_original>
